<compile_context>
chip_gen: v7x
topology: tpu7x:2x2x1
jax: 0.10.0
libtpu: 0.0.40
codegen_flags: <defaults>
</compile_context>

<pallas_src>
import functools

import jax
import jax.numpy as jnp
from jax import lax
from jax.experimental import pallas as pl
from jax.experimental.pallas import tpu as pltpu

TEMPERATURE = 0.07
BASE_TEMPERATURE = 0.07
CONTRAST_MODE = "all"  # only mode implemented by the reference forward


def _round_up(x, m):
    return (x + m - 1) // m * m


def _supcon_block_kernel(frow_ref, fall_ref, lrow_ref, lcol_ref,
                         sum_ref, cnt_ref, *, n_real, tm):
    # frow_ref: [tm, Dp]  bf16, pre-scaled by 1/temperature (LHS row block)
    # fall_ref: [Np, Dp]  bf16, unscaled, resident across the grid (RHS)
    # lrow_ref: [tm, 1]   int32 labels for this row block
    # lcol_ref: [1, Np]   int32 labels in lane layout (no in-kernel transpose)
    # sum_ref / cnt_ref: [1, 8, 128] f32 lane-dense per-block partials
    npad = fall_ref.shape[0]

    # Gram block on the MXU: contract the feature dim of both operands directly
    # (no f.T), bf16 inputs, f32 accumulation.  LHS already carries the 1/T.
    logits = lax.dot_general(
        frow_ref[...], fall_ref[...],
        dimension_numbers=(((1,), (1,)), ((), ())),
        preferred_element_type=jnp.float32)                 # [tm, Np]

    # Numerical stabilization (any per-row max cancels exactly in log_prob).
    logits = logits - jnp.max(logits, axis=1, keepdims=True)

    row_start = pl.program_id(0) * tm
    grow = row_start + lax.broadcasted_iota(jnp.int32, (tm, npad), 0)
    gcol = lax.broadcasted_iota(jnp.int32, (tm, npad), 1)
    col_ok = gcol < n_real
    keep = jnp.logical_and(col_ok, grow != gcol)            # columns in the LSE
    row_ok = grow < n_real

    # exp over real, non-diagonal columns only.  Mask exp_logits, never the
    # logits used in log_prob (avoids 0 * -inf).
    exp_logits = jnp.where(keep, jnp.exp(logits), 0.0)
    log_prob = logits - jnp.log(jnp.sum(exp_logits, axis=1, keepdims=True))

    # positives: same label, not self, both indices real (padding excluded).
    pos = jnp.logical_and(lrow_ref[...] == lcol_ref[...],
                          jnp.logical_and(keep, row_ok))
    pos_f = pos.astype(jnp.float32)

    numer = jnp.sum(pos_f * log_prob, axis=1, keepdims=True)   # [tm, 1]
    denom = jnp.sum(pos_f, axis=1, keepdims=True)              # [tm, 1]
    valid = denom > 0.0
    safe = jnp.where(valid, denom, 1.0)
    inv = pl.reciprocal(safe, approx=True)
    inv = inv * (2.0 - safe * inv)                             # one Newton step
    per_row = jnp.where(valid, numer * inv, 0.0)

    block_sum = jnp.sum(per_row)
    block_cnt = jnp.sum(valid.astype(jnp.float32))

    # Lane-dense (8,128) partial tiles -> unmasked vector stores.
    sum_ref[...] = jnp.full(sum_ref.shape, block_sum, dtype=jnp.float32)
    cnt_ref[...] = jnp.full(cnt_ref.shape, block_cnt, dtype=jnp.float32)


def supcon_loss(features, labels, temperature=TEMPERATURE,
                base_temperature=BASE_TEMPERATURE, row_tile=256):
    """features: [B, V, D] (V must be 1 to match the reference code exactly);
    labels: [B] int. Returns scalar float32 loss."""
    b, v, d = features.shape
    assert v == 1, "reference SupConLoss forward only runs with n_views == 1"
    n = b * v

    # contrast_feature = cat(unbind(features, dim=1), dim=0) -> [N, D]
    f32 = features.reshape(n, d).astype(jnp.float32)

    d_pad = _round_up(d, 128)                      # full lane / MXU-K width
    tm = row_tile if n >= row_tile else _round_up(n, 8)
    n_pad = _round_up(n, tm)

    f32 = jnp.pad(f32, ((0, n_pad - n), (0, d_pad - d)))
    # Fold 1/temperature into the LHS operand once (multiply, no N^2 divide).
    f_lhs = (f32 * (1.0 / temperature)).astype(jnp.bfloat16)
    f_rhs = f32.astype(jnp.bfloat16)

    lab = labels.reshape(-1).astype(jnp.int32)
    lab = jnp.pad(lab, (0, n_pad - n),
                  constant_values=jnp.iinfo(jnp.int32).min)
    lab_row = lab.reshape(n_pad, 1)
    lab_col = lab.reshape(1, n_pad)

    grid = n_pad // tm
    kernel = functools.partial(_supcon_block_kernel, n_real=n, tm=tm)

    sum_out, cnt_out = pl.pallas_call(
        kernel,
        out_shape=(jax.ShapeDtypeStruct((grid, 8, 128), jnp.float32),
                   jax.ShapeDtypeStruct((grid, 8, 128), jnp.float32)),
        grid=(grid,),
        in_specs=[
            pl.BlockSpec((tm, d_pad), lambda i: (i, 0)),        # LHS row block
            pl.BlockSpec((n_pad, d_pad), lambda i: (0, 0)),     # resident RHS
            pl.BlockSpec((tm, 1), lambda i: (i, 0)),            # labels (rows)
            pl.BlockSpec((1, n_pad), lambda i: (0, 0)),         # labels (lanes)
        ],
        out_specs=(pl.BlockSpec((1, 8, 128), lambda i: (i, 0, 0)),
                   pl.BlockSpec((1, 8, 128), lambda i: (i, 0, 0))),
        compiler_params=pltpu.CompilerParams(
            dimension_semantics=("parallel",)),
    )(f_lhs, f_rhs, lab_row, lab_col)

    total_sum = jnp.sum(sum_out[:, 0, 0])
    total_cnt = jnp.sum(cnt_out[:, 0, 0])
    # Same semantics as the reference: NaN if no row has any positive pair.
    return -(temperature / base_temperature) * total_sum / total_cnt


def _reference_supcon(features, labels, temperature=TEMPERATURE,
                      base_temperature=BASE_TEMPERATURE):
    # Pure-JAX f32 replica of the PyTorch forward (V == 1) for a sanity check.
    b, v, d = features.shape
    f = features.reshape(b * v, d).astype(jnp.float32)
    lab = labels.reshape(-1, 1)
    mask = (lab == lab.T).astype(jnp.float32)
    logits = f @ f.T / temperature
    logits = logits - jnp.max(logits, axis=1, keepdims=True)
    logits_mask = 1.0 - jnp.eye(b * v, dtype=jnp.float32)
    mask = mask * logits_mask
    exp_logits = jnp.exp(logits) * logits_mask
    log_prob = logits - jnp.log(exp_logits.sum(1, keepdims=True))
    numer = (mask * log_prob).sum(1)
    denom = mask.sum(1)
    valid = denom != 0
    per_row = jnp.where(valid, numer / jnp.where(valid, denom, 1.0), 0.0)
    nz = jnp.sum(valid)
    return -(temperature / base_temperature) * jnp.sum(per_row) / nz


if __name__ == "__main__":
    key = jax.random.PRNGKey(0)
    k1, k2 = jax.random.split(key)

    B, V, D = 8, 1, 32
    feats = jax.random.normal(k1, (B, V, D), dtype=jnp.float32)
    feats = feats / jnp.linalg.norm(feats, axis=-1, keepdims=True)
    labels = jax.random.randint(k2, (B,), 0, 3, dtype=jnp.int32)

    loss = supcon_loss(feats, labels)
    jax.block_until_ready(loss)

    ref = _reference_supcon(feats, labels)
    # bf16 Gram matmul introduces ~1e-3 relative drift in the logits, so the
    # self-test tolerance is loosened relative to a pure-f32 comparison.
    assert jnp.allclose(loss, ref, rtol=5e-2, atol=5e-2), (loss, ref)

    print("KERNEL_OK")
</pallas_src>

<mosaic_0001>
module attributes {stable_mosaic.version = 11 : i64} {
  func.func @_supcon_block_kernel(%arg0: i32, %arg1: memref<8x128xbf16, #tpu.memory_space<vmem>>, %arg2: memref<8x128xbf16, #tpu.memory_space<vmem>>, %arg3: memref<8x1xi32, #tpu.memory_space<vmem>>, %arg4: memref<1x8xi32, #tpu.memory_space<vmem>>, %arg5: memref<1x8x128xf32, #tpu.memory_space<vmem>>, %arg6: memref<1x8x128xf32, #tpu.memory_space<vmem>>) attributes {dimension_semantics = [#tpu.dimension_semantics<parallel>], iteration_bounds = array<i64: 1>, scalar_prefetch = 0 : i64, scratch_operands = 0 : i64, tpu.core_type = #tpu.core_type<tc>, window_params = [{transform_indices = @transform_0, window_bounds = array<i64: 8, 128>}, {pipeline_mode = #tpu.pipeline_mode<synchronous>, transform_indices = @transform_1, window_bounds = array<i64: 8, 128>}, {transform_indices = @transform_2, window_bounds = array<i64: 8, 1>}, {pipeline_mode = #tpu.pipeline_mode<synchronous>, transform_indices = @transform_3, window_bounds = array<i64: 1, 8>}, {transform_indices = @transform_4, window_bounds = array<i64: 1, 8, 128>}, {transform_indices = @transform_5, window_bounds = array<i64: 1, 8, 128>}]} {
    %c0 = arith.constant 0 : index
    %c0_0 = arith.constant 0 : index
    %0 = vector.load %arg1[%c0, %c0_0] : memref<8x128xbf16, #tpu.memory_space<vmem>>, vector<8x128xbf16>
    %c0_1 = arith.constant 0 : index
    %c0_2 = arith.constant 0 : index
    %1 = vector.load %arg2[%c0_1, %c0_2] : memref<8x128xbf16, #tpu.memory_space<vmem>>, vector<8x128xbf16>
    %cst = arith.constant dense<0.000000e+00> : vector<8x8xf32>
    %2 = tpu.matmul %0, %1, %cst {dimension_numbers = #tpu.dot_dimension_numbers<[1], [1], [0], [0], [0, 0, 1, 0], [], []>} : vector<8x128xbf16>, vector<8x128xbf16>, vector<8x8xf32> -> vector<8x8xf32>
    %cst_3 = arith.constant dense<0xFF800000> : vector<8xf32>
    %3 = vector.multi_reduction <maximumf>, %2, %cst_3 [1] : vector<8x8xf32> to vector<8xf32>
    %4 = vector.shape_cast %3 : vector<8xf32> to vector<8x1xf32>
    %5 = vector.broadcast %4 : vector<8x1xf32> to vector<8x8xf32>
    %6 = arith.subf %2, %5 : vector<8x8xf32>
    %c8_i32 = arith.constant 8 : i32
    %7 = arith.muli %arg0, %c8_i32 : i32
    %8 = tpu.iota {dimensions = array<i32: 0>} : vector<8x8xi32>
    %9 = vector.broadcast %7 : i32 to vector<8x8xi32>
    %10 = arith.addi %9, %8 : vector<8x8xi32>
    %11 = tpu.iota {dimensions = array<i32: 1>} : vector<8x8xi32>
    %c8_i32_4 = arith.constant 8 : i32
    %12 = vector.broadcast %c8_i32_4 : i32 to vector<8x8xi32>
    %13 = arith.cmpi slt, %11, %12 : vector<8x8xi32>
    %14 = arith.cmpi ne, %10, %11 : vector<8x8xi32>
    %15 = arith.andi %13, %14 : vector<8x8xi1>
    %c8_i32_5 = arith.constant 8 : i32
    %16 = vector.broadcast %c8_i32_5 : i32 to vector<8x8xi32>
    %17 = arith.cmpi slt, %10, %16 : vector<8x8xi32>
    %18 = math.exp %6 : vector<8x8xf32>
    %cst_6 = arith.constant 0.000000e+00 : f32
    %19 = vector.broadcast %cst_6 : f32 to vector<8x8xf32>
    %20 = arith.select %15, %18, %19 : vector<8x8xi1>, vector<8x8xf32>
    %cst_7 = arith.constant dense<0.000000e+00> : vector<8xf32>
    %21 = vector.multi_reduction <add>, %20, %cst_7 [1] : vector<8x8xf32> to vector<8xf32>
    %22 = vector.shape_cast %21 : vector<8xf32> to vector<8x1xf32>
    %23 = math.log %22 : vector<8x1xf32>
    %24 = vector.broadcast %23 : vector<8x1xf32> to vector<8x8xf32>
    %25 = arith.subf %6, %24 : vector<8x8xf32>
    %c0_8 = arith.constant 0 : index
    %c0_9 = arith.constant 0 : index
    %26 = vector.load %arg3[%c0_8, %c0_9] : memref<8x1xi32, #tpu.memory_space<vmem>>, vector<8x1xi32>
    %c0_10 = arith.constant 0 : index
    %c0_11 = arith.constant 0 : index
    %27 = vector.load %arg4[%c0_10, %c0_11] : memref<1x8xi32, #tpu.memory_space<vmem>>, vector<1x8xi32>
    %28 = vector.broadcast %26 : vector<8x1xi32> to vector<8x8xi32>
    %29 = vector.broadcast %27 : vector<1x8xi32> to vector<8x8xi32>
    %30 = arith.cmpi eq, %28, %29 : vector<8x8xi32>
    %31 = arith.andi %15, %17 : vector<8x8xi1>
    %32 = arith.andi %30, %31 : vector<8x8xi1>
    %33 = arith.extui %32 : vector<8x8xi1> to vector<8x8xi32>
    %34 = arith.sitofp %33 : vector<8x8xi32> to vector<8x8xf32>
    %35 = arith.mulf %34, %25 : vector<8x8xf32>
    %cst_12 = arith.constant dense<0.000000e+00> : vector<8xf32>
    %36 = vector.multi_reduction <add>, %35, %cst_12 [1] : vector<8x8xf32> to vector<8xf32>
    %37 = vector.shape_cast %36 : vector<8xf32> to vector<8x1xf32>
    %cst_13 = arith.constant dense<0.000000e+00> : vector<8xf32>
    %38 = vector.multi_reduction <add>, %34, %cst_13 [1] : vector<8x8xf32> to vector<8xf32>
    %39 = vector.shape_cast %38 : vector<8xf32> to vector<8x1xf32>
    %cst_14 = arith.constant 0.000000e+00 : f32
    %40 = vector.broadcast %cst_14 : f32 to vector<8x1xf32>
    %41 = arith.cmpf ogt, %39, %40 : vector<8x1xf32>
    %cst_15 = arith.constant 1.000000e+00 : f32
    %42 = vector.broadcast %cst_15 : f32 to vector<8x1xf32>
    %43 = arith.select %41, %39, %42 : vector<8x1xi1>, vector<8x1xf32>
    %44 = tpu.reciprocal %43 {approx = true} : vector<8x1xf32> -> vector<8x1xf32>
    %45 = arith.mulf %43, %44 : vector<8x1xf32>
    %cst_16 = arith.constant 2.000000e+00 : f32
    %46 = vector.broadcast %cst_16 : f32 to vector<8x1xf32>
    %47 = arith.subf %46, %45 : vector<8x1xf32>
    %48 = arith.mulf %44, %47 : vector<8x1xf32>
    %49 = arith.mulf %37, %48 : vector<8x1xf32>
    %cst_17 = arith.constant 0.000000e+00 : f32
    %50 = vector.broadcast %cst_17 : f32 to vector<8x1xf32>
    %51 = arith.select %41, %49, %50 : vector<8x1xi1>, vector<8x1xf32>
    %52 = vector.shape_cast %51 : vector<8x1xf32> to vector<1x8x1xf32>
    %cst_18 = arith.constant dense<0.000000e+00> : vector<1xf32>
    %53 = vector.multi_reduction <add>, %52, %cst_18 [1, 2] : vector<1x8x1xf32> to vector<1xf32>
    %54 = vector.shape_cast %53 : vector<1xf32> to vector<1x1x1xf32>
    %55 = vector.extract %54[0, 0, 0] : f32 from vector<1x1x1xf32>
    %56 = arith.extui %41 : vector<8x1xi1> to vector<8x1xi32>
    %57 = arith.sitofp %56 : vector<8x1xi32> to vector<8x1xf32>
    %58 = vector.shape_cast %57 : vector<8x1xf32> to vector<1x8x1xf32>
    %cst_19 = arith.constant dense<0.000000e+00> : vector<1xf32>
    %59 = vector.multi_reduction <add>, %58, %cst_19 [1, 2] : vector<1x8x1xf32> to vector<1xf32>
    %60 = vector.shape_cast %59 : vector<1xf32> to vector<1x1x1xf32>
    %61 = vector.extract %60[0, 0, 0] : f32 from vector<1x1x1xf32>
    %62 = vector.broadcast %55 : f32 to vector<1x8x128xf32>
    %c0_20 = arith.constant 0 : index
    %c0_21 = arith.constant 0 : index
    %c0_22 = arith.constant 0 : index
    %63 = vector.load %arg5[%c0_20, %c0_21, %c0_22] : memref<1x8x128xf32, #tpu.memory_space<vmem>>, vector<1x8x128xf32>
    tpu.vector_store %arg5[%c0_20, %c0_21, %c0_22], %62 {strides = array<i32>} : memref<1x8x128xf32, #tpu.memory_space<vmem>>, vector<1x8x128xf32>,
    %64 = vector.broadcast %61 : f32 to vector<1x8x128xf32>
    %c0_23 = arith.constant 0 : index
    %c0_24 = arith.constant 0 : index
    %c0_25 = arith.constant 0 : index
    %65 = vector.load %arg6[%c0_23, %c0_24, %c0_25] : memref<1x8x128xf32, #tpu.memory_space<vmem>>, vector<1x8x128xf32>
    tpu.vector_store %arg6[%c0_23, %c0_24, %c0_25], %64 {strides = array<i32>} : memref<1x8x128xf32, #tpu.memory_space<vmem>>, vector<1x8x128xf32>,
    return
  }
  func.func @transform_0(%arg0: i32) -> (i32, i32) {
    %c0_i32 = arith.constant 0 : i32
    %c0_i32_0 = arith.constant 0 : i32
    return %arg0, %c0_i32 : i32, i32
  }
  func.func @transform_1(%arg0: i32) -> (i32, i32) {
    %c0_i32 = arith.constant 0 : i32
    %c0_i32_0 = arith.constant 0 : i32
    %c0_i32_1 = arith.constant 0 : i32
    return %c0_i32, %c0_i32_0 : i32, i32
  }
  func.func @transform_2(%arg0: i32) -> (i32, i32) {
    %c0_i32 = arith.constant 0 : i32
    %c0_i32_0 = arith.constant 0 : i32
    return %arg0, %c0_i32 : i32, i32
  }
  func.func @transform_3(%arg0: i32) -> (i32, i32) {
    %c0_i32 = arith.constant 0 : i32
    %c0_i32_0 = arith.constant 0 : i32
    %c0_i32_1 = arith.constant 0 : i32
    return %c0_i32, %c0_i32_0 : i32, i32
  }
  func.func @transform_4(%arg0: i32) -> (i32, i32, i32) {
    %c0_i32 = arith.constant 0 : i32
    %c0_i32_0 = arith.constant 0 : i32
    %c0_i32_1 = arith.constant 0 : i32
    return %arg0, %c0_i32, %c0_i32_0 : i32, i32, i32
  }
  func.func @transform_5(%arg0: i32) -> (i32, i32, i32) {
    %c0_i32 = arith.constant 0 : i32
    %c0_i32_0 = arith.constant 0 : i32
    %c0_i32_1 = arith.constant 0 : i32
    return %arg0, %c0_i32, %c0_i32_0 : i32, i32, i32
  }
}

</mosaic_0001>

<llo_original>
// kernel: tpu_custom_call.1
$region0: #{tpu_custom_call.1}
  #allocation0 [shape = 'u32[]', space=smem, size = 0x4, offset = 0x4, fixed_abs, tag = 'smem constant byte address 0x4 - core index']
  #allocation1 [shape = 'u32[144,128]{1,0:T(1,128)}', space=vmem, size = 0x12000, scoped, tag = 'internal scratch']
  %s0 = inlined_call_operand.vmem [shape: bf16[8,128], index: 0, kind: input, shape index: {}]
  %s1 = inlined_call_operand.vmem [shape: bf16[8,128], index: 1, kind: input, shape index: {}]
  %s2 = inlined_call_operand.vmem [shape: s32[8,1], index: 2, kind: input, shape index: {}]
  %s3 = inlined_call_operand.vmem [shape: s32[1,8], index: 3, kind: input, shape index: {}]
  %s4 = inlined_call_operand.hbm [shape: f32[1,8,128], index: 4, kind: output, shape index: {0}]
  %s5 = inlined_call_operand.hbm [shape: f32[1,8,128], index: 5, kind: output, shape index: {1}]
  %6 = xla_tuple %s4, %s5
  %s7 = sld [smem:[#allocation0]]
  $region34: #{tpu_custom_call.1} parent=0
    _
  %s9 = ssub.s32 1, %s7
  %s10 = scalar_select 0, %s9, %s7
  $region1: #{tpu_custom_call.1} parent=0
    #allocation2 [shape = 'u8[4096]{0}', space=vmem, size = 0x1000, scoped, tag = 'output window, operand 0, single buffered']
    #allocation3 [shape = 's32[1]{0}', space=sflag, size = 0x4, scoped, tag = 'scoped memory for tpu_custom_call.1']
    #allocation4 [shape = 'u8[4096]{0}', space=vmem, size = 0x1000, scoped, tag = 'output window, operand 1, single buffered']
    #allocation5 [shape = 's32[1]{0}', space=sflag, size = 0x4, scoped, tag = 'scoped memory for tpu_custom_call.1']
    %11 = vsyncpa [#allocation3], 0
    %12 = vsyncpa [#allocation5], 0
    // Predicated region
    $region2: #{tpu_custom_call.1} parent=1 // pred_check
      _
    $region3: #{tpu_custom_call.1} parent=1 // pred_check_branch
      %14 = sbr.rel (0) target = $region5
    $region4: #{tpu_custom_call.1} parent=1 // pred_region
      _
    $region5: #{tpu_custom_call.1} parent=1 // pred_fallthru
      _
    // Predicated region
    $region6: #{tpu_custom_call.1} parent=1 // pred_check
      _
    $region7: #{tpu_custom_call.1} parent=1 // pred_check_branch
      %16 = sbr.rel (0) target = $region9
    $region8: #{tpu_custom_call.1} parent=1 // pred_region
      _
    $region9: #{tpu_custom_call.1} parent=1 // pred_fallthru
      _
    // Predicated region
    $region10: #{tpu_custom_call.1} parent=1 // pred_check
      _
    $region11: #{tpu_custom_call.1} parent=1 // pred_check_branch
      %18 = sbr.rel (0) target = $region13
    $region12: #{tpu_custom_call.1} parent=1 // pred_region
      _
    $region13: #{tpu_custom_call.1} parent=1 // pred_fallthru
      _
    // Predicated region
    $region14: #{tpu_custom_call.1} parent=1 // pred_check
      _
    $region15: #{tpu_custom_call.1} parent=1 // pred_check_branch
      %20 = sbr.rel (0) target = $region17
    $region16: #{tpu_custom_call.1} parent=1 // pred_region
      _
    $region17: #{tpu_custom_call.1} parent=1 // pred_fallthru
      _
    %v22 = vld [vmem:[%s0] sm:$0xf]
    %v23 = vld [vmem:[%s1] sm:$0xf]
    %24 = vmatprep.subr.bf16.mxu0 0
    %25 = vmatpush1.bf16.xpose.msra.mxu0 %v23
    %26 = vmatprep.subr.bf16.mxu0 0
    %27 = vmatpush1.bf16.xpose.msra.mxu0 0
    %28 = vmatprep.subr.bf16.mxu0 0
    %29 = vmatpush1.bf16.xpose.msra.mxu0 0
    %30 = vmatprep.subr.bf16.mxu0 0
    %31 = vmatpush1.bf16.xpose.msra.mxu0 0
    %32 = vmatprep.subr.bf16.mxu0 0
    %33 = vmatpush1.bf16.xpose.msra.mxu0 0
    %34 = vmatprep.subr.bf16.mxu0 0
    %35 = vmatpush1.bf16.xpose.msra.mxu0 0
    %36 = vmatprep.subr.bf16.mxu0 0
    %37 = vmatpush1.bf16.xpose.msra.mxu0 0
    %38 = vmatprep.subr.bf16.mxu0 0
    %39 = vmatpush1.bf16.xpose.msra.mxu0 0
    %40 = vmatprep.subr.bf16.mxu0 0
    %41 = vmatpush1.bf16.xpose.msra.mxu0 0
    %42 = vmatprep.subr.bf16.mxu0 0
    %43 = vmatpush1.bf16.xpose.msra.mxu0 0
    %44 = vmatprep.subr.bf16.mxu0 0
    %45 = vmatpush1.bf16.xpose.msra.mxu0 0
    %46 = vmatprep.subr.bf16.mxu0 0
    %47 = vmatpush1.bf16.xpose.msra.mxu0 0
    %48 = vmatprep.subr.bf16.mxu0 0
    %49 = vmatpush1.bf16.xpose.msra.mxu0 0
    %50 = vmatprep.subr.bf16.mxu0 0
    %51 = vmatpush1.bf16.xpose.msra.mxu0 0
    %52 = vmatprep.subr.bf16.mxu0 0
    %53 = vmatpush1.bf16.xpose.msra.mxu0 0
    %54 = vmatprep.subr.bf16.mxu0 0
    %55 = vmatpush1.bf16.xpose.msra.mxu0 0
    %56 = vmatprep.mubr.bf16.mxu0 0
    %57 = vmatmul.mubr.bf16.gmra.mrb[0].mxu0 %v22
    %v58 = vpop.f32.mrb[0].mxu0
    %v59 = vadd.f32 0.0, %v58
    %v60 = vpop.f32.mrb[0].mxu0
    %v61 = vpop.f32.mrb[0].mxu0
    %v62 = vpop.f32.mrb[0].mxu0
    %63 = vdwg.mxu0
    %vm64 = vcmask 64512
    %v65 = vsel %vm64, %v59, -inf
    %66 = vmax.xlane.f32.xlu0 %v65
    %v67 = vpop.xlane.xlu0 %66
    %v68 = vsub.f32 %v59, %v67
    %s69 = smul.u32 0, 8
    %v70 = vlaneseq
    %v71 = vshrl.u32 %v70, 7
    %v72 = vstv %s69
    %v73 = vadd.s32 %v72, %v71
    %v74 = vlaneseq
    %v75 = vand.u32 %v74, 127
    %vm76 = vcmp.lt.s32.totalorder %v75, 8
    %vm77 = vcmp.ne.s32.totalorder %v73, %v75
    %vm78 = vmand %vm76, %vm77
    %vm79 = vcmp.lt.s32.totalorder %v73, 8
    %v80 = vmul.f32 %v68, 1.442695
    %v81 = vpow.pop %v80
    %v82 = vsel %vm78, %v81, 0.0
    %v83 = vsel %vm64, %v82, 0.0
    %84 = vadd.xlane.f32.xlu0 %v83
    %v85 = vpop.xlane.xlu0 %84
    %v86 = vlog2.pop %v85
    %v87 = vmul.f32 %v86, 0.6931472
    %v88 = vsub.f32 %v68, %v87
    %v89 = vld [vmem:[%s2] sm:$0xff]
    %v90 = vld [vmem:[%s3] sm:$0x1]
    %91 = vset.pattern.permute.xlu0 0
    %92 = vperm.xlu0 %91, %v89
    %v93 = vpop.permute.xlu0 %92
    %v94 = vlaneseq
    %v95 = vshrl.u32 %v94, 7
    %v96 = vsub.s32 0, %v95
    %v97 = vrot.slane %v90, %v96
    %vm98 = vcmp.eq.s32.totalorder %v93, %v97
    %vm99 = vmand %vm78, %vm79
    %vm100 = vmand %vm98, %vm99
    %v101 = vsel %vm100, 1, 0
    %v102 = vcvt.s32.f32 %v101
    %v103 = vmul.f32 %v102, %v88
    %v104 = vsel %vm64, %v103, 0.0
    %105 = vadd.xlane.f32.xlu0 %v104
    %v106 = vpop.xlane.xlu0 %105
    %v107 = vsel %vm64, %v102, 0.0
    %108 = vadd.xlane.f32.xlu0 %v107
    %v109 = vpop.xlane.xlu0 %108
    %vm110 = vcmp.gt.f32.partialorder %v109, 0.0
    %v111 = vsel %vm110, %v109, 1.0
    %v112 = vrcp.pop %v111
    %v113 = vmul.f32 %v111, %v112
    %v114 = vsub.f32 2.0, %v113
    %v115 = vmul.f32 %v112, %v114
    %v116 = vmul.f32 %v106, %v115
    %v117 = vsel %vm110, %v116, 0.0
    %vm118 = vcmask 7168
    %v119 = vsel %vm118, %v117, 0.0
    %120 = vadd.xlane.f32.xlu0 %v119
    %v121 = vpop.xlane.xlu0 %120
    %v122 = vrot.slane %v121, 4
    %v123 = vadd.f32 %v121, %v122
    %v124 = vrot.slane %v123, 2
    %v125 = vadd.f32 %v123, %v124
    %v126 = vrot.slane %v125, 1
    %v127 = vadd.f32 %v125, %v126
    %s128 = vtos %v127
    %v129 = vsel %vm110, 1, 0
    %v130 = vcvt.s32.f32 %v129
    %v131 = vsel %vm118, %v130, 0.0
    %132 = vadd.xlane.f32.xlu0 %v131
    %v133 = vpop.xlane.xlu0 %132
    %v134 = vrot.slane %v133, 4
    %v135 = vadd.f32 %v133, %v134
    %v136 = vrot.slane %v135, 2
    %v137 = vadd.f32 %v135, %v136
    %v138 = vrot.slane %v137, 1
    %v139 = vadd.f32 %v137, %v138
    %s140 = vtos %v139
    %v141 = vstv %s128
    %142 = vst [vmem:[#allocation2] sm:$0xff] %v141
    %v143 = vstv %s140
    %144 = vst [vmem:[#allocation4] sm:$0xff] %v143
    // Predicated region
    $region18: #{tpu_custom_call.1} parent=1 // pred_check
      _
    $region19: #{tpu_custom_call.1} parent=1 // pred_check_branch
      %146 = sbr.rel (0) target = $region21
    $region20: #{tpu_custom_call.1} parent=1 // pred_region
      %s148 = ssub.s32 128, 128
      %149 = vsyncadd [#allocation3], %s148
      %s151 = sshll.u32 [#allocation2], 4
      %s152 = int_to_ptr.vmem [resolvable:$true] %s151
      %154 = dma.vmem_to_hbm [thread:$0]  %s152, 128, %s4, [#allocation3]
    $region21: #{tpu_custom_call.1} parent=1 // pred_fallthru
      _
    // Predicated region
    $region22: #{tpu_custom_call.1} parent=1 // pred_check
      _
    $region23: #{tpu_custom_call.1} parent=1 // pred_check_branch
      %156 = sbr.rel (0) target = $region25
    $region24: #{tpu_custom_call.1} parent=1 // pred_region
      %s158 = ssub.s32 128, 128
      %159 = vsyncadd [#allocation5], %s158
      %s161 = sshll.u32 [#allocation4], 4
      %s162 = int_to_ptr.vmem [resolvable:$true] %s161
      %164 = dma.vmem_to_hbm [thread:$0]  %s162, 128, %s5, [#allocation5]
    $region25: #{tpu_custom_call.1} parent=1 // pred_fallthru
      _
    // Predicated region
    $region26: #{tpu_custom_call.1} parent=1 // pred_check
      _
    $region27: #{tpu_custom_call.1} parent=1 // pred_check_branch
      %166 = sbr.rel (0) target = $region29
    $region28: #{tpu_custom_call.1} parent=1 // pred_region
      %167 = dma.done [#allocation3], 128
    $region29: #{tpu_custom_call.1} parent=1 // pred_fallthru
      _
    // Predicated region
    $region30: #{tpu_custom_call.1} parent=1 // pred_check
      _
    $region31: #{tpu_custom_call.1} parent=1 // pred_check_branch
      %169 = sbr.rel (0) target = $region33
    $region32: #{tpu_custom_call.1} parent=1 // pred_region
      %170 = dma.done [#allocation5], 128
    $region33: #{tpu_custom_call.1} parent=1 // pred_fallthru
      _
    %171 = vsyncpa [#allocation3], 1
    %172 = vsyncpa [#allocation5], 1

</llo_original>
